<compile_context>
chip_gen: v6e
topology: v6e:2x2x1
jax: 0.10.0
libtpu: 0.0.40
codegen_flags: <defaults>
</compile_context>

<pallas_src>
import jax
import jax.numpy as jnp
from jax.experimental import pallas as pl
from jax.experimental.pallas import tpu as pltpu


def ensemble_kernel(x_ref, w1_ref, b1_ref, w2bd_ref, b2_ref, out_ref):
    # Layer 1 for every ensemble member at once:
    #   (tn, D) @ (D, M*H) -> (tn, M*H), one lane-dense MXU matmul.
    h = jnp.dot(x_ref[...], w1_ref[...], preferred_element_type=jnp.float32)
    h = jnp.maximum(h + b1_ref[...], 0.0)            # f32, full (8,128) vregs

    # Layer 2 as a second MXU matmul against the block-diagonal weight:
    #   (tn, M*H) @ (M*H, M) -> (tn, M)   (column m only sees member m's rows)
    y = jnp.dot(h, w2bd_ref[...], preferred_element_type=jnp.float32)
    y = y + b2_ref[...]                               # (tn, M)

    # Member axis -> sublanes, batch -> lanes: std/mean over members becomes a
    # sublane reduce and the output store stays lane-contiguous.
    y = jnp.transpose(y)                              # (M, tn)
    mean = jnp.mean(y, axis=0, keepdims=True)         # (1, tn)
    var = jnp.mean((y - mean) ** 2, axis=0, keepdims=True)
    std = jnp.sqrt(var)                               # population std (unbiased=False)

    # Pack both results into one (2, tn) store: row 0 = std, row 1 = mean.
    out_ref[...] = jnp.concatenate([std, mean], axis=0)


def ensemble_forward(x, w1, b1, w2, b2, *, mxu_dtype=jnp.float32):
    """Returns (std, mean), each (n_out,), matching torch.std_mean(dim=1, unbiased=False)."""
    N, D = x.shape
    M, _, H = w1.shape

    # Merge the ensemble axis into the matmul output columns: (D, M*H), lane-dense.
    w1_2d = jnp.transpose(w1, (1, 0, 2)).reshape(D, M * H).astype(mxu_dtype)
    b1_2d = b1.reshape(1, M * H).astype(jnp.float32)

    # Block-diagonal second-layer weight: w2_bd[m*H + h, m] = w2[m, h].
    eye = jnp.eye(M, dtype=jnp.float32)
    w2_bd = (w2.astype(jnp.float32)[:, :, None] * eye[:, None, :]).reshape(M * H, M)
    b2_2d = b2.reshape(1, M).astype(jnp.float32)

    x_in = x.astype(mxu_dtype)

    # Batch tiling: single block at small N; lane-dense 128/512-row tiles when
    # N scales up (keeps the double-buffered VMEM footprint bounded on v7x and
    # lets the parallel grid axis use both TensorCores).
    if N % 512 == 0:
        tn = 512
    elif N % 128 == 0:
        tn = 128
    else:
        tn = N
    grid = (N // tn,)

    out = pl.pallas_call(
        ensemble_kernel,
        out_shape=jax.ShapeDtypeStruct((2, N), jnp.float32),
        grid_spec=pltpu.PrefetchScalarGridSpec(
            num_scalar_prefetch=0,
            grid=grid,
            in_specs=[
                pl.BlockSpec((tn, D), lambda i: (i, 0)),       # x tile
                pl.BlockSpec((D, M * H), lambda i: (0, 0)),    # layer-1 weight (resident)
                pl.BlockSpec((1, M * H), lambda i: (0, 0)),    # layer-1 bias
                pl.BlockSpec((M * H, M), lambda i: (0, 0)),    # block-diag layer-2 weight
                pl.BlockSpec((1, M), lambda i: (0, 0)),        # layer-2 bias
            ],
            out_specs=pl.BlockSpec((2, tn), lambda i: (0, i)),
        ),
        compiler_params=pltpu.CompilerParams(
            dimension_semantics=("parallel",)),
    )(x_in, w1_2d, b1_2d, w2_bd, b2_2d)

    return out[0], out[1]   # (std, mean) — same order as torch.std_mean


def _pick_mxu_dtype():
    # bf16 MXU inputs (f32 accumulation) on v6e/v7x; plain f32 elsewhere.
    try:
        kind = jax.devices()[0].device_kind.lower()
    except Exception:
        return jnp.float32
    if "v6" in kind or "v7" in kind:
        return jnp.bfloat16
    return jnp.float32


def _reference(x, w1, b1, w2, b2):
    # Pure-JAX reference mirroring the PyTorch member loop + std_mean (f32).
    cols = []
    for m in range(w1.shape[0]):
        h = jnp.maximum(x @ w1[m] + b1[m], 0.0)
        y = h @ w2[m][:, None] + b2[m]               # (N, 1)
        cols.append(y.reshape(y.shape[0], 1))
    out = jnp.concatenate(cols, axis=1)              # (N, M)
    mean = jnp.mean(out, axis=1)
    std = jnp.sqrt(jnp.mean((out - mean[:, None]) ** 2, axis=1))
    return std, mean


if __name__ == "__main__":
    # Small shapes consistent with the module's forward:
    #   n_out (batch) = 8, feature dim = 32, hidden = 32, ensemble size M = 4.
    N, D, H, M = 8, 32, 32, 4

    key = jax.random.PRNGKey(0)
    kx, kw1, kb1, kw2, kb2 = jax.random.split(key, 5)

    x = jax.random.normal(kx, (N, D), dtype=jnp.float32)
    w1 = jax.random.normal(kw1, (M, D, H), dtype=jnp.float32) * 0.1
    b1 = jax.random.normal(kb1, (M, H), dtype=jnp.float32) * 0.1
    w2 = jax.random.normal(kw2, (M, H), dtype=jnp.float32) * 0.1
    b2 = jax.random.normal(kb2, (M, 1), dtype=jnp.float32) * 0.1

    mxu_dtype = _pick_mxu_dtype()
    std, mean = ensemble_forward(x, w1, b1, w2, b2, mxu_dtype=mxu_dtype)
    jax.block_until_ready((std, mean))

    std_ref, mean_ref = _reference(x, w1, b1, w2, b2)
    if mxu_dtype == jnp.bfloat16:
        atol, rtol = 1e-2, 5e-2   # bf16 MXU inputs, f32 accumulate
    else:
        atol, rtol = 1e-5, 1e-5
    assert jnp.allclose(std, std_ref, atol=atol, rtol=rtol), "std mismatch"
    assert jnp.allclose(mean, mean_ref, atol=atol, rtol=rtol), "mean mismatch"

    print("KERNEL_OK")
</pallas_src>

<mosaic_0001>
module attributes {stable_mosaic.version = 11 : i64} {
  func.func @ensemble_kernel(%arg0: i32, %arg1: memref<8x32xf32, #tpu.memory_space<vmem>>, %arg2: memref<32x128xf32, #tpu.memory_space<vmem>>, %arg3: memref<1x128xf32, #tpu.memory_space<vmem>>, %arg4: memref<128x4xf32, #tpu.memory_space<vmem>>, %arg5: memref<1x4xf32, #tpu.memory_space<vmem>>, %arg6: memref<2x8xf32, #tpu.memory_space<vmem>>) attributes {dimension_semantics = [#tpu.dimension_semantics<parallel>], iteration_bounds = array<i64: 1>, scalar_prefetch = 0 : i64, scratch_operands = 0 : i64, tpu.core_type = #tpu.core_type<tc>, window_params = [{transform_indices = @transform_0, window_bounds = array<i64: 8, 32>}, {pipeline_mode = #tpu.pipeline_mode<synchronous>, transform_indices = @transform_1, window_bounds = array<i64: 32, 128>}, {pipeline_mode = #tpu.pipeline_mode<synchronous>, transform_indices = @transform_2, window_bounds = array<i64: 1, 128>}, {pipeline_mode = #tpu.pipeline_mode<synchronous>, transform_indices = @transform_3, window_bounds = array<i64: 128, 4>}, {pipeline_mode = #tpu.pipeline_mode<synchronous>, transform_indices = @transform_4, window_bounds = array<i64: 1, 4>}, {transform_indices = @transform_5, window_bounds = array<i64: 2, 8>}]} {
    %c0 = arith.constant 0 : index
    %c0_0 = arith.constant 0 : index
    %0 = vector.load %arg1[%c0, %c0_0] : memref<8x32xf32, #tpu.memory_space<vmem>>, vector<8x32xf32>
    %c0_1 = arith.constant 0 : index
    %c0_2 = arith.constant 0 : index
    %1 = vector.load %arg2[%c0_1, %c0_2] : memref<32x128xf32, #tpu.memory_space<vmem>>, vector<32x128xf32>
    %cst = arith.constant dense<0.000000e+00> : vector<8x128xf32>
    %2 = tpu.matmul %0, %1, %cst {dimension_numbers = #tpu.dot_dimension_numbers<[1], [0], [0], [1], [0, 0, 1, 1], [], []>} : vector<8x32xf32>, vector<32x128xf32>, vector<8x128xf32> -> vector<8x128xf32>
    %c0_3 = arith.constant 0 : index
    %c0_4 = arith.constant 0 : index
    %3 = vector.load %arg3[%c0_3, %c0_4] : memref<1x128xf32, #tpu.memory_space<vmem>>, vector<1x128xf32>
    %4 = vector.broadcast %3 : vector<1x128xf32> to vector<8x128xf32>
    %5 = arith.addf %2, %4 : vector<8x128xf32>
    %cst_5 = arith.constant 0.000000e+00 : f32
    %6 = vector.broadcast %cst_5 : f32 to vector<8x128xf32>
    %7 = arith.maximumf %5, %6 : vector<8x128xf32>
    %c0_6 = arith.constant 0 : index
    %c0_7 = arith.constant 0 : index
    %8 = vector.load %arg4[%c0_6, %c0_7] : memref<128x4xf32, #tpu.memory_space<vmem>>, vector<128x4xf32>
    %cst_8 = arith.constant dense<0.000000e+00> : vector<8x4xf32>
    %9 = tpu.matmul %7, %8, %cst_8 {dimension_numbers = #tpu.dot_dimension_numbers<[1], [0], [0], [1], [0, 0, 1, 1], [], []>} : vector<8x128xf32>, vector<128x4xf32>, vector<8x4xf32> -> vector<8x4xf32>
    %c0_9 = arith.constant 0 : index
    %c0_10 = arith.constant 0 : index
    %10 = vector.load %arg5[%c0_9, %c0_10] : memref<1x4xf32, #tpu.memory_space<vmem>>, vector<1x4xf32>
    %11 = vector.broadcast %10 : vector<1x4xf32> to vector<8x4xf32>
    %12 = arith.addf %9, %11 : vector<8x4xf32>
    %13 = tpu.transpose %12, [1, 0] : vector<8x4xf32> -> vector<4x8xf32>
    %cst_11 = arith.constant dense<0.000000e+00> : vector<8xf32>
    %14 = vector.multi_reduction <add>, %13, %cst_11 [0] : vector<4x8xf32> to vector<8xf32>
    %15 = vector.shape_cast %14 : vector<8xf32> to vector<1x8xf32>
    %cst_12 = arith.constant 4.000000e+00 : f32
    %16 = vector.broadcast %cst_12 : f32 to vector<1x8xf32>
    %17 = arith.divf %15, %16 : vector<1x8xf32>
    %18 = vector.broadcast %17 : vector<1x8xf32> to vector<4x8xf32>
    %19 = arith.subf %13, %18 : vector<4x8xf32>
    %20 = arith.mulf %19, %19 : vector<4x8xf32>
    %cst_13 = arith.constant dense<0.000000e+00> : vector<8xf32>
    %21 = vector.multi_reduction <add>, %20, %cst_13 [0] : vector<4x8xf32> to vector<8xf32>
    %22 = vector.shape_cast %21 : vector<8xf32> to vector<1x8xf32>
    %cst_14 = arith.constant 4.000000e+00 : f32
    %23 = vector.broadcast %cst_14 : f32 to vector<1x8xf32>
    %24 = arith.divf %22, %23 : vector<1x8xf32>
    %25 = math.sqrt %24 : vector<1x8xf32>
    %26 = tpu.concatenate %25, %17 in 0 : vector<1x8xf32>, vector<1x8xf32> -> vector<2x8xf32>
    %c0_15 = arith.constant 0 : index
    %c0_16 = arith.constant 0 : index
    %27 = vector.load %arg6[%c0_15, %c0_16] : memref<2x8xf32, #tpu.memory_space<vmem>>, vector<2x8xf32>
    tpu.vector_store %arg6[%c0_15, %c0_16], %26 {strides = array<i32>} : memref<2x8xf32, #tpu.memory_space<vmem>>, vector<2x8xf32>,
    return
  }
  func.func @transform_0(%arg0: i32) -> (i32, i32) {
    %c0_i32 = arith.constant 0 : i32
    %c0_i32_0 = arith.constant 0 : i32
    return %arg0, %c0_i32 : i32, i32
  }
  func.func @transform_1(%arg0: i32) -> (i32, i32) {
    %c0_i32 = arith.constant 0 : i32
    %c0_i32_0 = arith.constant 0 : i32
    %c0_i32_1 = arith.constant 0 : i32
    return %c0_i32, %c0_i32_0 : i32, i32
  }
  func.func @transform_2(%arg0: i32) -> (i32, i32) {
    %c0_i32 = arith.constant 0 : i32
    %c0_i32_0 = arith.constant 0 : i32
    %c0_i32_1 = arith.constant 0 : i32
    return %c0_i32, %c0_i32_0 : i32, i32
  }
  func.func @transform_3(%arg0: i32) -> (i32, i32) {
    %c0_i32 = arith.constant 0 : i32
    %c0_i32_0 = arith.constant 0 : i32
    %c0_i32_1 = arith.constant 0 : i32
    return %c0_i32, %c0_i32_0 : i32, i32
  }
  func.func @transform_4(%arg0: i32) -> (i32, i32) {
    %c0_i32 = arith.constant 0 : i32
    %c0_i32_0 = arith.constant 0 : i32
    %c0_i32_1 = arith.constant 0 : i32
    return %c0_i32, %c0_i32_0 : i32, i32
  }
  func.func @transform_5(%arg0: i32) -> (i32, i32) {
    %c0_i32 = arith.constant 0 : i32
    %c0_i32_0 = arith.constant 0 : i32
    return %c0_i32, %arg0 : i32, i32
  }
}

</mosaic_0001>

<llo_original>
// kernel: tpu_custom_call.1
$region0: #{tpu_custom_call.1}
  #allocation0 [shape = 'u32[]', space=smem, size = 0x4, offset = 0x4, fixed_abs, tag = 'smem constant byte address 0x4 - core index']
  #allocation1 [shape = 'u32[144,128]{1,0:T(1,128)}', space=vmem, size = 0x12000, scoped, tag = 'internal scratch']
  %s0 = inlined_call_operand.vmem [shape: f32[8,32], index: 0, kind: input, shape index: {}]
  %s1 = inlined_call_operand.vmem [shape: f32[32,128], index: 1, kind: input, shape index: {}]
  %s2 = inlined_call_operand.vmem [shape: f32[1,128], index: 2, kind: input, shape index: {}]
  %s3 = inlined_call_operand.vmem [shape: f32[128,4], index: 3, kind: input, shape index: {}]
  %s4 = inlined_call_operand.vmem [shape: f32[1,4], index: 4, kind: input, shape index: {}]
  %s5 = inlined_call_operand.hbm [shape: f32[2,8], index: 5, kind: output, shape index: {}]
  %s6 = sld [smem:[#allocation0]]
  $region30: #{tpu_custom_call.1} parent=0
    _
  %s8 = ssub.s32 1, %s6
  %s9 = scalar_select 0, %s8, %s6
  $region1: #{tpu_custom_call.1} parent=0
    #allocation2 [shape = 'u8[1024]{0}', space=vmem, size = 0x400, scoped, tag = 'output window, operand 0, single buffered']
    #allocation3 [shape = 's32[1]{0}', space=sflag, size = 0x4, scoped, tag = 'scoped memory for tpu_custom_call.1']
    %10 = vsyncpa [#allocation3], 0
    // Predicated region
    $region2: #{tpu_custom_call.1} parent=1 // pred_check
      _
    $region3: #{tpu_custom_call.1} parent=1 // pred_check_branch
      %12 = sbr.rel (0) target = $region5
    $region4: #{tpu_custom_call.1} parent=1 // pred_region
      _
    $region5: #{tpu_custom_call.1} parent=1 // pred_fallthru
      _
    // Predicated region
    $region6: #{tpu_custom_call.1} parent=1 // pred_check
      _
    $region7: #{tpu_custom_call.1} parent=1 // pred_check_branch
      %14 = sbr.rel (0) target = $region9
    $region8: #{tpu_custom_call.1} parent=1 // pred_region
      _
    $region9: #{tpu_custom_call.1} parent=1 // pred_fallthru
      _
    // Predicated region
    $region10: #{tpu_custom_call.1} parent=1 // pred_check
      _
    $region11: #{tpu_custom_call.1} parent=1 // pred_check_branch
      %16 = sbr.rel (0) target = $region13
    $region12: #{tpu_custom_call.1} parent=1 // pred_region
      _
    $region13: #{tpu_custom_call.1} parent=1 // pred_fallthru
      _
    // Predicated region
    $region14: #{tpu_custom_call.1} parent=1 // pred_check
      _
    $region15: #{tpu_custom_call.1} parent=1 // pred_check_branch
      %18 = sbr.rel (0) target = $region17
    $region16: #{tpu_custom_call.1} parent=1 // pred_region
      _
    $region17: #{tpu_custom_call.1} parent=1 // pred_fallthru
      _
    // Predicated region
    $region18: #{tpu_custom_call.1} parent=1 // pred_check
      _
    $region19: #{tpu_custom_call.1} parent=1 // pred_check_branch
      %20 = sbr.rel (0) target = $region21
    $region20: #{tpu_custom_call.1} parent=1 // pred_region
      _
    $region21: #{tpu_custom_call.1} parent=1 // pred_fallthru
      _
    %v21 = vld [vmem:[%s0] sm:$0xff]
    %v22 = vld [vmem:[%s1] sm:$0xff]
    %v23 = vld [vmem:[%s1 + $0x8] sm:$0xff]
    %v24 = vld [vmem:[%s1 + $0x10] sm:$0xff]
    %v25 = vld [vmem:[%s1 + $0x18] sm:$0xff]
    %v26 = vld [vmem:[%s2] sm:$0x1]
    %v28 = vlaneseq
    %v29 = vshrl.u32 %v28, 7
    %v30 = vsub.s32 0, %v29
    %v31 = vrot.slane %v26, %v30
    %vm33 = vcmask 261120
    %v35 = vsel %vm33, %v21, 0
    %37 = vmatprep.subr.mxu0 0.0
    %38 = vmatpush1.msra.mxu0 0.0
    %39 = vmatprep.subr.mxu0 0.0
    %40 = vmatpush1.msra.mxu0 0.0
    %41 = vmatprep.subr.mxu0 0.0
    %42 = vmatpush1.msra.mxu0 0.0
    %43 = vmatprep.subr.mxu0 0.0
    %44 = vmatpush1.msra.mxu0 0.0
    %45 = vmatprep.subr.mxu0 0.0
    %46 = vmatpush1.msra.mxu0 0.0
    %47 = vmatprep.subr.mxu0 0.0
    %48 = vmatpush1.msra.mxu0 0.0
    %49 = vmatprep.subr.mxu0 0.0
    %50 = vmatpush1.msra.mxu0 0.0
    %51 = vmatprep.subr.mxu0 0.0
    %52 = vmatpush1.msra.mxu0 0.0
    %53 = vmatprep.subr.mxu0 0.0
    %54 = vmatpush1.msra.mxu0 0.0
    %55 = vmatprep.subr.mxu0 0.0
    %56 = vmatpush1.msra.mxu0 0.0
    %57 = vmatprep.subr.mxu0 0.0
    %58 = vmatpush1.msra.mxu0 0.0
    %59 = vmatprep.subr.mxu0 0.0
    %60 = vmatpush1.msra.mxu0 0.0
    %61 = vmatprep.subr.mxu0 0.0
    %62 = vmatpush1.msra.mxu0 %v25
    %63 = vmatprep.subr.mxu0 0.0
    %64 = vmatpush1.msra.mxu0 %v24
    %65 = vmatprep.subr.mxu0 0.0
    %66 = vmatpush1.msra.mxu0 %v23
    %67 = vmatprep.subr.mxu0 0.0
    %68 = vmatpush1.msra.mxu0 %v22
    %69 = vmatprep.subr.mxu0 0.0
    %70 = vmatpush2.msra.mxu0 0.0
    %71 = vmatprep.subr.mxu0 0.0
    %72 = vmatpush2.msra.mxu0 0.0
    %73 = vmatprep.subr.mxu0 0.0
    %74 = vmatpush2.msra.mxu0 0.0
    %75 = vmatprep.subr.mxu0 0.0
    %76 = vmatpush2.msra.mxu0 0.0
    %77 = vmatprep.subr.mxu0 0.0
    %78 = vmatpush2.msra.mxu0 0.0
    %79 = vmatprep.subr.mxu0 0.0
    %80 = vmatpush2.msra.mxu0 0.0
    %81 = vmatprep.subr.mxu0 0.0
    %82 = vmatpush2.msra.mxu0 0.0
    %83 = vmatprep.subr.mxu0 0.0
    %84 = vmatpush2.msra.mxu0 0.0
    %85 = vmatprep.subr.mxu0 0.0
    %86 = vmatpush2.msra.mxu0 0.0
    %87 = vmatprep.subr.mxu0 0.0
    %88 = vmatpush2.msra.mxu0 0.0
    %89 = vmatprep.subr.mxu0 0.0
    %90 = vmatpush2.msra.mxu0 0.0
    %91 = vmatprep.subr.mxu0 0.0
    %92 = vmatpush2.msra.mxu0 0.0
    %93 = vmatprep.subr.mxu0 0.0
    %94 = vmatpush2.msra.mxu0 0.0
    %95 = vmatprep.subr.mxu0 0.0
    %96 = vmatpush2.msra.mxu0 0.0
    %97 = vmatprep.subr.mxu0 0.0
    %98 = vmatpush2.msra.mxu0 0.0
    %99 = vmatprep.subr.mxu0 0.0
    %100 = vmatpush2.msra.mxu0 0.0
    %101 = vmatprep.mubr.f32.mxu0 0.0
    %102 = vmatmul.mubr.f32.gmra.mxu0 %v35
    %v103 = vpop.f32.mrf.mxu0
    %v104 = vadd.f32 %v31, %v103
    %v105 = vpop.f32.mrf.mxu0
    %106 = vdwg.mxu0
    %v107 = vmax.f32 %v104, 0.0
    %v108 = vld [vmem:[%s3] sm:$0xff]
    %v109 = vld [vmem:[%s3 + $0x8] sm:$0xff]
    %v110 = vld [vmem:[%s3 + $0x10] sm:$0xff]
    %v111 = vld [vmem:[%s3 + $0x18] sm:$0xff]
    %v112 = vld [vmem:[%s3 + $0x20] sm:$0xff]
    %v113 = vld [vmem:[%s3 + $0x28] sm:$0xff]
    %v114 = vld [vmem:[%s3 + $0x30] sm:$0xff]
    %v115 = vld [vmem:[%s3 + $0x38] sm:$0xff]
    %v116 = vld [vmem:[%s3 + $0x40] sm:$0xff]
    %v117 = vld [vmem:[%s3 + $0x48] sm:$0xff]
    %v118 = vld [vmem:[%s3 + $0x50] sm:$0xff]
    %v119 = vld [vmem:[%s3 + $0x58] sm:$0xff]
    %v120 = vld [vmem:[%s3 + $0x60] sm:$0xff]
    %v121 = vld [vmem:[%s3 + $0x68] sm:$0xff]
    %v122 = vld [vmem:[%s3 + $0x70] sm:$0xff]
    %v123 = vld [vmem:[%s3 + $0x78] sm:$0xff]
    %v124 = vld [vmem:[%s4] sm:$0x1]
    %v126 = vlaneseq
    %v127 = vshrl.u32 %v126, 7
    %v128 = vsub.s32 0, %v127
    %v129 = vrot.slane %v124, %v128
    %131 = vmatprep.subr.mxu0 0.0
    %132 = vmatpush1.msra.mxu0 %v123
    %133 = vmatprep.subr.mxu0 0.0
    %134 = vmatpush1.msra.mxu0 %v122
    %135 = vmatprep.subr.mxu0 0.0
    %136 = vmatpush1.msra.mxu0 %v121
    %137 = vmatprep.subr.mxu0 0.0
    %138 = vmatpush1.msra.mxu0 %v120
    %139 = vmatprep.subr.mxu0 0.0
    %140 = vmatpush1.msra.mxu0 %v119
    %141 = vmatprep.subr.mxu0 0.0
    %142 = vmatpush1.msra.mxu0 %v118
    %143 = vmatprep.subr.mxu0 0.0
    %144 = vmatpush1.msra.mxu0 %v117
    %145 = vmatprep.subr.mxu0 0.0
    %146 = vmatpush1.msra.mxu0 %v116
    %147 = vmatprep.subr.mxu0 0.0
    %148 = vmatpush1.msra.mxu0 %v115
    %149 = vmatprep.subr.mxu0 0.0
    %150 = vmatpush1.msra.mxu0 %v114
    %151 = vmatprep.subr.mxu0 0.0
    %152 = vmatpush1.msra.mxu0 %v113
    %153 = vmatprep.subr.mxu0 0.0
    %154 = vmatpush1.msra.mxu0 %v112
    %155 = vmatprep.subr.mxu0 0.0
    %156 = vmatpush1.msra.mxu0 %v111
    %157 = vmatprep.subr.mxu0 0.0
    %158 = vmatpush1.msra.mxu0 %v110
    %159 = vmatprep.subr.mxu0 0.0
    %160 = vmatpush1.msra.mxu0 %v109
    %161 = vmatprep.subr.mxu0 0.0
    %162 = vmatpush1.msra.mxu0 %v108
    %163 = vmatprep.subr.mxu0 0.0
    %164 = vmatpush2.msra.mxu0 0.0
    %165 = vmatprep.subr.mxu0 0.0
    %166 = vmatpush2.msra.mxu0 0.0
    %167 = vmatprep.subr.mxu0 0.0
    %168 = vmatpush2.msra.mxu0 0.0
    %169 = vmatprep.subr.mxu0 0.0
    %170 = vmatpush2.msra.mxu0 0.0
    %171 = vmatprep.subr.mxu0 0.0
    %172 = vmatpush2.msra.mxu0 0.0
    %173 = vmatprep.subr.mxu0 0.0
    %174 = vmatpush2.msra.mxu0 0.0
    %175 = vmatprep.subr.mxu0 0.0
    %176 = vmatpush2.msra.mxu0 0.0
    %177 = vmatprep.subr.mxu0 0.0
    %178 = vmatpush2.msra.mxu0 0.0
    %179 = vmatprep.subr.mxu0 0.0
    %180 = vmatpush2.msra.mxu0 0.0
    %181 = vmatprep.subr.mxu0 0.0
    %182 = vmatpush2.msra.mxu0 0.0
    %183 = vmatprep.subr.mxu0 0.0
    %184 = vmatpush2.msra.mxu0 0.0
    %185 = vmatprep.subr.mxu0 0.0
    %186 = vmatpush2.msra.mxu0 0.0
    %187 = vmatprep.subr.mxu0 0.0
    %188 = vmatpush2.msra.mxu0 0.0
    %189 = vmatprep.subr.mxu0 0.0
    %190 = vmatpush2.msra.mxu0 0.0
    %191 = vmatprep.subr.mxu0 0.0
    %192 = vmatpush2.msra.mxu0 0.0
    %193 = vmatprep.subr.mxu0 0.0
    %194 = vmatpush2.msra.mxu0 0.0
    %195 = vmatprep.mubr.f32.mxu0 0.0
    %196 = vmatmul.mubr.f32.gmra.mxu0 %v107
    %v197 = vpop.f32.mrf.mxu0
    %v198 = vadd.f32 %v129, %v197
    %v199 = vpop.f32.mrf.mxu0
    %200 = vdwg.mxu0
    %201 = vxpose.xlu0.b32.start [1/16] %v198, 128
    %202 = vxpose.xlu0.b32.cont [2/16] 0.0, 128
    %203 = vxpose.xlu0.b32.cont [3/16] 0.0, 128
    %204 = vxpose.xlu0.b32.cont [4/16] 0.0, 128
    %205 = vxpose.xlu0.b32.cont [5/16] 0.0, 128
    %206 = vxpose.xlu0.b32.cont [6/16] 0.0, 128
    %207 = vxpose.xlu0.b32.cont [7/16] 0.0, 128
    %208 = vxpose.xlu0.b32.cont [8/16] 0.0, 128
    %209 = vxpose.xlu0.b32.cont [9/16] 0.0, 128
    %210 = vxpose.xlu0.b32.cont [10/16] 0.0, 128
    %211 = vxpose.xlu0.b32.cont [11/16] 0.0, 128
    %212 = vxpose.xlu0.b32.cont [12/16] 0.0, 128
    %213 = vxpose.xlu0.b32.cont [13/16] 0.0, 128
    %214 = vxpose.xlu0.b32.cont [14/16] 0.0, 128
    %215 = vxpose.xlu0.b32.cont [15/16] 0.0, 128
    %216 = vxpose.xlu0.b32.end [16/16] 0.0, 128
    %v217 = vpop.trf.xlu0
    %v218 = vpop.trf.xlu0
    %v219 = vpop.trf.xlu0
    %v220 = vpop.trf.xlu0
    %v221 = vpop.trf.xlu0
    %v222 = vpop.trf.xlu0
    %v223 = vpop.trf.xlu0
    %v224 = vpop.trf.xlu0
    %v225 = vpop.trf.xlu0
    %v226 = vpop.trf.xlu0
    %v227 = vpop.trf.xlu0
    %v228 = vpop.trf.xlu0
    %v229 = vpop.trf.xlu0
    %v230 = vpop.trf.xlu0
    %v231 = vpop.trf.xlu0
    %v232 = vpop.trf.xlu0
    %vm233 = vcmask 60416
    %v234 = vsel %vm233, %v217, 0.0
    %v235 = vrot.slane %v234, 4
    %v236 = vadd.f32 %v234, %v235
    %v237 = vrot.slane %v236, 2
    %v238 = vadd.f32 %v236, %v237
    %v239 = vrot.slane %v238, 1
    %v240 = vadd.f32 %v238, %v239
    %v241 = vrcp.pop 4.0
    %v242 = vmul.f32 %v240, %v241
    %v243 = vsub.f32 %v217, %v242
    %v244 = vmul.f32 %v243, %v243
    %v245 = vsel %vm233, %v244, 0.0
    %v246 = vrot.slane %v245, 4
    %v247 = vadd.f32 %v245, %v246
    %v248 = vrot.slane %v247, 2
    %v249 = vadd.f32 %v247, %v248
    %v250 = vrot.slane %v249, 1
    %v251 = vadd.f32 %v249, %v250
    %v252 = vmul.f32 %v251, %v241
    %v253 = vrsqrt.pop %v252
    %v254 = vmul.f32 %v252, %v253
    %vm255 = vcmp.eq.f32.partialorder %v252, inf
    %v256 = vsel %vm255, %v252, %v254
    %vm257 = vcmp.eq.f32.partialorder %v252, 0.0
    %v258 = vand.u32 %v252, 2147483648
    %v259 = vsel %vm257, %v258, %v256
    %vm260 = vcmask 1040384
    %v261 = vsel %vm260, %v259, %v242
    %vm262 = vcmask 58368
    %263 = vst.msk [vmem:[#allocation2] sm:$0x3] %vm262, %v261
    // Predicated region
    $region22: #{tpu_custom_call.1} parent=1 // pred_check
      _
    $region23: #{tpu_custom_call.1} parent=1 // pred_check_branch
      %265 = sbr.rel (0) target = $region25
    $region24: #{tpu_custom_call.1} parent=1 // pred_region
      %s267 = ssub.s32 32, 32
      %268 = vsyncadd [#allocation3], %s267
      %s270 = sshll.u32 [#allocation2], 4
      %s271 = int_to_ptr.vmem [resolvable:$true] %s270
      %273 = dma.vmem_to_hbm [thread:$0]  %s271, 32, %s5, [#allocation3]
    $region25: #{tpu_custom_call.1} parent=1 // pred_fallthru
      _
    // Predicated region
    $region26: #{tpu_custom_call.1} parent=1 // pred_check
      _
    $region27: #{tpu_custom_call.1} parent=1 // pred_check_branch
      %275 = sbr.rel (0) target = $region29
    $region28: #{tpu_custom_call.1} parent=1 // pred_region
      %276 = dma.done [#allocation3], 32
    $region29: #{tpu_custom_call.1} parent=1 // pred_fallthru
      _
    %277 = vsyncpa [#allocation3], 1

</llo_original>
